<compile_context>
chip_gen: v7x
topology: tpu7x:2x2x1
jax: 0.10.0
libtpu: 0.0.40
codegen_flags: <defaults>
</compile_context>

<pallas_src>
import jax
import jax.numpy as jnp
from jax.experimental import pallas as pl
from jax.experimental.pallas import tpu as pltpu


def _round_up(x: int, m: int) -> int:
    return (x + m - 1) // m * m


def _cdiv(a: int, b: int) -> int:
    return -(-a // b)


def actor_kernel(x_ref, w1_ref, b1_ref, w2_ref, b2_ref, w3_ref, b3_ref, out_ref):
    # Streamed state stays f32 in HBM/VMEM; cast to bf16 only as the MXU operand.
    x = x_ref[...].astype(w1_ref.dtype)

    # Layer 1: Linear (bf16 MXU operands, f32 accumulate) + bias + ReLU (f32).
    h = jnp.dot(x, w1_ref[...], preferred_element_type=jnp.float32)
    h = jnp.maximum(h + b1_ref[...], 0.0)

    # Layer 2: Linear + ReLU (cast activations to bf16 only for the MXU).
    h = jnp.dot(h.astype(w2_ref.dtype), w2_ref[...],
                preferred_element_type=jnp.float32)
    h = jnp.maximum(h + b2_ref[...], 0.0)

    # Output layer: Linear + Tanh, scaled by 2 (Actor.forward = 2 * layers(state)).
    h = jnp.dot(h.astype(w3_ref.dtype), w3_ref[...],
                preferred_element_type=jnp.float32)
    out_ref[...] = (2.0 * jnp.tanh(h + b3_ref[...])).astype(out_ref.dtype)


def prepare_params(params, compute_dtype=jnp.bfloat16):
    """Pad only the internal (hidden) feature dims to 128 and cast weights to bf16.

    params: list of (W, b) with W (in_dim, out_dim), b (out_dim,) or (1, out_dim).
    The first layer's in_dim (state_dim) and the last layer's out_dim
    (action_dim) are left unpadded so the HBM-streamed state/output arrays can
    be fed/emitted without any wrapper-side pad or slice.  Zero padding of the
    hidden dims is exact: padded output cols get zero weight/bias (ReLU(0)=0)
    and feed zero weight rows of the next layer.
    """
    n = len(params)
    packed = []
    for i, (w, b) in enumerate(params):
        in_d, out_d = w.shape
        in_p = in_d if i == 0 else _round_up(in_d, 128)
        out_p = out_d if i == n - 1 else _round_up(out_d, 128)
        w_pad = jnp.zeros((in_p, out_p), compute_dtype)
        w_pad = w_pad.at[:in_d, :out_d].set(w.astype(compute_dtype))
        b_pad = jnp.zeros((1, out_p), jnp.float32)
        b_pad = b_pad.at[:, :out_d].set(jnp.reshape(b, (1, -1)).astype(jnp.float32))
        packed.append((w_pad, b_pad))
    return packed


def actor_forward(state, packed_params, *, block_b=512, out_dtype=jnp.float32,
                  vmem_budget_bytes=16 << 20):
    """state: (B, state_dim) f32.  packed_params: output of prepare_params."""
    # TODO(synk): for tiny batches (< ~128 rows) a plain XLA dot chain avoids
    # the Pallas launch overhead; kept on the Pallas path here so the kernel
    # is exercised.
    (w1, b1), (w2, b2), (w3, b3) = packed_params
    B, S = state.shape
    assert w1.shape[0] == S, (w1.shape, S)
    A = w3.shape[1]

    # ---- batch tile selection -------------------------------------------
    # * blocks divide B nearly evenly (no up-to-2x tail padding waste)
    # * >= 2 blocks when the batch is big enough so the "parallel" axis can
    #   shard across v7x's 2 TensorCores
    # * rows a multiple of 16 (bf16 sublane packing)
    n_blocks = max(1, _cdiv(B, block_b))
    if B > 32:
        n_blocks = max(n_blocks, 2)
    tb = _round_up(_cdiv(B, n_blocks), 16)
    tb = max(16, min(tb, _round_up(B, 16)))

    # Crude VMEM estimate: double-buffered streamed blocks + resident
    # (double-buffered) weights/biases + intermediate f32 activations.
    h_max = max(w1.shape[1], w2.shape[1])
    weight_bytes = 2 * sum(int(w.size) * w.dtype.itemsize + int(b.size) * 4
                           for w, b in packed_params)

    def vmem_estimate(t):
        stream = 2 * t * S * 4 + 2 * t * A * 4
        act = 2 * t * h_max * 4
        return stream + act + weight_bytes

    while tb > 16 and vmem_estimate(tb) > vmem_budget_bytes:
        tb = _round_up(max(16, tb // 2), 16)

    grid = (pl.cdiv(B, tb),)            # partial last block: OOB rows masked on store
    pinned = lambda i: (0, 0)           # weights/biases resident across all blocks

    cp_kwargs = dict(dimension_semantics=("parallel",))
    est = vmem_estimate(tb)
    if est > vmem_budget_bytes:
        # Weights alone exceed the conservative budget; raise the scoped limit.
        cp_kwargs["vmem_limit_bytes"] = int(min(est + (4 << 20), 64 << 20))

    out = pl.pallas_call(
        actor_kernel,
        out_shape=jax.ShapeDtypeStruct((B, A), out_dtype),
        grid_spec=pltpu.PrefetchScalarGridSpec(
            num_scalar_prefetch=0,
            grid=grid,
            in_specs=[
                pl.BlockSpec((tb, S), lambda i: (i, 0)),   # streamed f32 states
                pl.BlockSpec(w1.shape, pinned),
                pl.BlockSpec(b1.shape, pinned),
                pl.BlockSpec(w2.shape, pinned),
                pl.BlockSpec(b2.shape, pinned),
                pl.BlockSpec(w3.shape, pinned),
                pl.BlockSpec(b3.shape, pinned),
            ],
            out_specs=pl.BlockSpec((tb, A), lambda i: (i, 0)),
        ),
        compiler_params=pltpu.CompilerParams(**cp_kwargs),
    )(state, w1, b1, w2, b2, w3, b3)

    return out


def init_linear(key, in_dim, out_dim):
    """Deterministic init mimicking PyTorch nn.Linear default (uniform +/- 1/sqrt(in))."""
    kw, kb = jax.random.split(key)
    bound = 1.0 / jnp.sqrt(jnp.float32(in_dim))
    # Stored as (in_dim, out_dim) = transpose of PyTorch's (out, in).
    w = jax.random.uniform(kw, (in_dim, out_dim), jnp.float32, -bound, bound)
    b = jax.random.uniform(kb, (out_dim,), jnp.float32, -bound, bound)
    return w, b


def reference_forward(state, params):
    h = state
    for i, (w, b) in enumerate(params):
        h = h @ w + b
        if i < len(params) - 1:
            h = jnp.maximum(h, 0.0)
        else:
            h = jnp.tanh(h)
    return 2.0 * h


if __name__ == "__main__":
    # Small shapes consistent with Actor(state_dim, action_dim, hidden_dim).
    state_dim = 8
    action_dim = 4
    hidden_dim = (32, 32)
    batch = 2

    key = jax.random.PRNGKey(0)
    k_state, k1, k2, k3 = jax.random.split(key, 4)

    state = jax.random.normal(k_state, (batch, state_dim), jnp.float32)

    dims = (state_dim,) + hidden_dim
    params = [
        init_linear(k1, dims[0], dims[1]),
        init_linear(k2, dims[1], dims[2]),
        init_linear(k3, hidden_dim[-1], action_dim),
    ]

    packed = prepare_params(params)
    out = actor_forward(state, packed)
    out = jax.block_until_ready(out)

    ref = reference_forward(state, params)
    assert out.shape == (batch, action_dim), out.shape
    # bf16 MXU operands (weights + cast state) with f32 accumulation ->
    # moderate tolerance vs the f32 reference.
    assert jnp.allclose(out, ref, atol=3e-2, rtol=3e-2), (out, ref)

    print("KERNEL_OK")
</pallas_src>

<mosaic_0001>
module attributes {stable_mosaic.version = 11 : i64} {
  func.func @actor_kernel(%arg0: i32, %arg1: memref<16x8xf32, #tpu.memory_space<vmem>>, %arg2: memref<8x128xbf16, #tpu.memory_space<vmem>>, %arg3: memref<1x128xf32, #tpu.memory_space<vmem>>, %arg4: memref<128x128xbf16, #tpu.memory_space<vmem>>, %arg5: memref<1x128xf32, #tpu.memory_space<vmem>>, %arg6: memref<128x4xbf16, #tpu.memory_space<vmem>>, %arg7: memref<1x4xf32, #tpu.memory_space<vmem>>, %arg8: memref<16x4xf32, #tpu.memory_space<vmem>>) attributes {dimension_semantics = [#tpu.dimension_semantics<parallel>], iteration_bounds = array<i64: 1>, scalar_prefetch = 0 : i64, scratch_operands = 0 : i64, tpu.core_type = #tpu.core_type<tc>, window_params = [{transform_indices = @transform_0, window_bounds = array<i64: 16, 8>}, {pipeline_mode = #tpu.pipeline_mode<synchronous>, transform_indices = @transform_1, window_bounds = array<i64: 8, 128>}, {pipeline_mode = #tpu.pipeline_mode<synchronous>, transform_indices = @transform_2, window_bounds = array<i64: 1, 128>}, {pipeline_mode = #tpu.pipeline_mode<synchronous>, transform_indices = @transform_3, window_bounds = array<i64: 128, 128>}, {pipeline_mode = #tpu.pipeline_mode<synchronous>, transform_indices = @transform_4, window_bounds = array<i64: 1, 128>}, {pipeline_mode = #tpu.pipeline_mode<synchronous>, transform_indices = @transform_5, window_bounds = array<i64: 128, 4>}, {pipeline_mode = #tpu.pipeline_mode<synchronous>, transform_indices = @transform_6, window_bounds = array<i64: 1, 4>}, {transform_indices = @transform_7, window_bounds = array<i64: 16, 4>}]} {
    %c0 = arith.constant 0 : index
    %c0_0 = arith.constant 0 : index
    %0 = vector.load %arg1[%c0, %c0_0] : memref<16x8xf32, #tpu.memory_space<vmem>>, vector<16x8xf32>
    %1 = arith.truncf %0 : vector<16x8xf32> to vector<16x8xbf16>
    %c0_1 = arith.constant 0 : index
    %c0_2 = arith.constant 0 : index
    %2 = vector.load %arg2[%c0_1, %c0_2] : memref<8x128xbf16, #tpu.memory_space<vmem>>, vector<8x128xbf16>
    %cst = arith.constant dense<0.000000e+00> : vector<16x128xf32>
    %3 = tpu.matmul %1, %2, %cst {dimension_numbers = #tpu.dot_dimension_numbers<[1], [0], [0], [1], [0, 0, 1, 1], [], []>} : vector<16x8xbf16>, vector<8x128xbf16>, vector<16x128xf32> -> vector<16x128xf32>
    %c0_3 = arith.constant 0 : index
    %c0_4 = arith.constant 0 : index
    %4 = vector.load %arg3[%c0_3, %c0_4] : memref<1x128xf32, #tpu.memory_space<vmem>>, vector<1x128xf32>
    %5 = vector.broadcast %4 : vector<1x128xf32> to vector<16x128xf32>
    %6 = arith.addf %3, %5 : vector<16x128xf32>
    %cst_5 = arith.constant 0.000000e+00 : f32
    %7 = vector.broadcast %cst_5 : f32 to vector<16x128xf32>
    %8 = arith.maximumf %6, %7 : vector<16x128xf32>
    %9 = arith.truncf %8 : vector<16x128xf32> to vector<16x128xbf16>
    %c0_6 = arith.constant 0 : index
    %c0_7 = arith.constant 0 : index
    %10 = vector.load %arg4[%c0_6, %c0_7] : memref<128x128xbf16, #tpu.memory_space<vmem>>, vector<128x128xbf16>
    %cst_8 = arith.constant dense<0.000000e+00> : vector<16x128xf32>
    %11 = tpu.matmul %9, %10, %cst_8 {dimension_numbers = #tpu.dot_dimension_numbers<[1], [0], [0], [1], [0, 0, 1, 1], [], []>} : vector<16x128xbf16>, vector<128x128xbf16>, vector<16x128xf32> -> vector<16x128xf32>
    %c0_9 = arith.constant 0 : index
    %c0_10 = arith.constant 0 : index
    %12 = vector.load %arg5[%c0_9, %c0_10] : memref<1x128xf32, #tpu.memory_space<vmem>>, vector<1x128xf32>
    %13 = vector.broadcast %12 : vector<1x128xf32> to vector<16x128xf32>
    %14 = arith.addf %11, %13 : vector<16x128xf32>
    %cst_11 = arith.constant 0.000000e+00 : f32
    %15 = vector.broadcast %cst_11 : f32 to vector<16x128xf32>
    %16 = arith.maximumf %14, %15 : vector<16x128xf32>
    %17 = arith.truncf %16 : vector<16x128xf32> to vector<16x128xbf16>
    %c0_12 = arith.constant 0 : index
    %c0_13 = arith.constant 0 : index
    %18 = vector.load %arg6[%c0_12, %c0_13] : memref<128x4xbf16, #tpu.memory_space<vmem>>, vector<128x4xbf16>
    %cst_14 = arith.constant dense<0.000000e+00> : vector<16x4xf32>
    %19 = tpu.matmul %17, %18, %cst_14 {dimension_numbers = #tpu.dot_dimension_numbers<[1], [0], [0], [1], [0, 0, 1, 1], [], []>} : vector<16x128xbf16>, vector<128x4xbf16>, vector<16x4xf32> -> vector<16x4xf32>
    %c0_15 = arith.constant 0 : index
    %c0_16 = arith.constant 0 : index
    %20 = vector.load %arg7[%c0_15, %c0_16] : memref<1x4xf32, #tpu.memory_space<vmem>>, vector<1x4xf32>
    %21 = vector.broadcast %20 : vector<1x4xf32> to vector<16x4xf32>
    %22 = arith.addf %19, %21 : vector<16x4xf32>
    %23 = math.tanh %22 : vector<16x4xf32>
    %cst_17 = arith.constant 2.000000e+00 : f32
    %24 = vector.broadcast %cst_17 : f32 to vector<16x4xf32>
    %25 = arith.mulf %24, %23 : vector<16x4xf32>
    %c0_18 = arith.constant 0 : index
    %c0_19 = arith.constant 0 : index
    %26 = vector.load %arg8[%c0_18, %c0_19] : memref<16x4xf32, #tpu.memory_space<vmem>>, vector<16x4xf32>
    tpu.vector_store %arg8[%c0_18, %c0_19], %25 {strides = array<i32>} : memref<16x4xf32, #tpu.memory_space<vmem>>, vector<16x4xf32>,
    return
  }
  func.func @transform_0(%arg0: i32) -> (i32, i32) {
    %c0_i32 = arith.constant 0 : i32
    %c0_i32_0 = arith.constant 0 : i32
    return %arg0, %c0_i32 : i32, i32
  }
  func.func @transform_1(%arg0: i32) -> (i32, i32) {
    %c0_i32 = arith.constant 0 : i32
    %c0_i32_0 = arith.constant 0 : i32
    %c0_i32_1 = arith.constant 0 : i32
    return %c0_i32, %c0_i32_0 : i32, i32
  }
  func.func @transform_2(%arg0: i32) -> (i32, i32) {
    %c0_i32 = arith.constant 0 : i32
    %c0_i32_0 = arith.constant 0 : i32
    %c0_i32_1 = arith.constant 0 : i32
    return %c0_i32, %c0_i32_0 : i32, i32
  }
  func.func @transform_3(%arg0: i32) -> (i32, i32) {
    %c0_i32 = arith.constant 0 : i32
    %c0_i32_0 = arith.constant 0 : i32
    %c0_i32_1 = arith.constant 0 : i32
    return %c0_i32, %c0_i32_0 : i32, i32
  }
  func.func @transform_4(%arg0: i32) -> (i32, i32) {
    %c0_i32 = arith.constant 0 : i32
    %c0_i32_0 = arith.constant 0 : i32
    %c0_i32_1 = arith.constant 0 : i32
    return %c0_i32, %c0_i32_0 : i32, i32
  }
  func.func @transform_5(%arg0: i32) -> (i32, i32) {
    %c0_i32 = arith.constant 0 : i32
    %c0_i32_0 = arith.constant 0 : i32
    %c0_i32_1 = arith.constant 0 : i32
    return %c0_i32, %c0_i32_0 : i32, i32
  }
  func.func @transform_6(%arg0: i32) -> (i32, i32) {
    %c0_i32 = arith.constant 0 : i32
    %c0_i32_0 = arith.constant 0 : i32
    %c0_i32_1 = arith.constant 0 : i32
    return %c0_i32, %c0_i32_0 : i32, i32
  }
  func.func @transform_7(%arg0: i32) -> (i32, i32) {
    %c0_i32 = arith.constant 0 : i32
    %c0_i32_0 = arith.constant 0 : i32
    return %arg0, %c0_i32 : i32, i32
  }
}

</mosaic_0001>

<llo_original>
// kernel: tpu_custom_call.1
$region0: #{tpu_custom_call.1}
  #allocation0 [shape = 'u32[]', space=smem, size = 0x4, offset = 0x4, fixed_abs, tag = 'smem constant byte address 0x4 - core index']
  #allocation1 [shape = 'u32[144,128]{1,0:T(1,128)}', space=vmem, size = 0x12000, scoped, tag = 'internal scratch']
  %s0 = inlined_call_operand.vmem [shape: f32[2,8], index: 0, kind: input, shape index: {}]
  %s1 = inlined_call_operand.vmem [shape: bf16[8,128], index: 1, kind: input, shape index: {}]
  %s2 = inlined_call_operand.vmem [shape: f32[1,128], index: 2, kind: input, shape index: {}]
  %s3 = inlined_call_operand.vmem [shape: bf16[128,128], index: 3, kind: input, shape index: {}]
  %s4 = inlined_call_operand.vmem [shape: f32[1,128], index: 4, kind: input, shape index: {}]
  %s5 = inlined_call_operand.vmem [shape: bf16[128,4], index: 5, kind: input, shape index: {}]
  %s6 = inlined_call_operand.vmem [shape: f32[1,4], index: 6, kind: input, shape index: {}]
  %s7 = inlined_call_operand.hbm [shape: f32[2,4], index: 7, kind: output, shape index: {}]
  %s8 = sld [smem:[#allocation0]]
  $region38: #{tpu_custom_call.1} parent=0
    _
  %s10 = ssub.s32 1, %s8
  %s11 = scalar_select 0, %s10, %s8
  $region1: #{tpu_custom_call.1} parent=0
    #allocation2 [shape = 'u8[8192]{0}', space=vmem, size = 0x2000, scoped, tag = 'output window, operand 0, single buffered']
    #allocation3 [shape = 's32[1]{0}', space=sflag, size = 0x4, scoped, tag = 'scoped memory for tpu_custom_call.1']
    %12 = vsyncpa [#allocation3], 0
    // Predicated region
    $region2: #{tpu_custom_call.1} parent=1 // pred_check
      _
    $region3: #{tpu_custom_call.1} parent=1 // pred_check_branch
      %14 = sbr.rel (0) target = $region5
    $region4: #{tpu_custom_call.1} parent=1 // pred_region
      _
    $region5: #{tpu_custom_call.1} parent=1 // pred_fallthru
      _
    // Predicated region
    $region6: #{tpu_custom_call.1} parent=1 // pred_check
      _
    $region7: #{tpu_custom_call.1} parent=1 // pred_check_branch
      %16 = sbr.rel (0) target = $region9
    $region8: #{tpu_custom_call.1} parent=1 // pred_region
      _
    $region9: #{tpu_custom_call.1} parent=1 // pred_fallthru
      _
    // Predicated region
    $region10: #{tpu_custom_call.1} parent=1 // pred_check
      _
    $region11: #{tpu_custom_call.1} parent=1 // pred_check_branch
      %18 = sbr.rel (0) target = $region13
    $region12: #{tpu_custom_call.1} parent=1 // pred_region
      _
    $region13: #{tpu_custom_call.1} parent=1 // pred_fallthru
      _
    // Predicated region
    $region14: #{tpu_custom_call.1} parent=1 // pred_check
      _
    $region15: #{tpu_custom_call.1} parent=1 // pred_check_branch
      %20 = sbr.rel (0) target = $region17
    $region16: #{tpu_custom_call.1} parent=1 // pred_region
      _
    $region17: #{tpu_custom_call.1} parent=1 // pred_fallthru
      _
    // Predicated region
    $region18: #{tpu_custom_call.1} parent=1 // pred_check
      _
    $region19: #{tpu_custom_call.1} parent=1 // pred_check_branch
      %22 = sbr.rel (0) target = $region21
    $region20: #{tpu_custom_call.1} parent=1 // pred_region
      _
    $region21: #{tpu_custom_call.1} parent=1 // pred_fallthru
      _
    // Predicated region
    $region22: #{tpu_custom_call.1} parent=1 // pred_check
      _
    $region23: #{tpu_custom_call.1} parent=1 // pred_check_branch
      %24 = sbr.rel (0) target = $region25
    $region24: #{tpu_custom_call.1} parent=1 // pred_region
      _
    $region25: #{tpu_custom_call.1} parent=1 // pred_fallthru
      _
    // Predicated region
    $region26: #{tpu_custom_call.1} parent=1 // pred_check
      _
    $region27: #{tpu_custom_call.1} parent=1 // pred_check_branch
      %26 = sbr.rel (0) target = $region29
    $region28: #{tpu_custom_call.1} parent=1 // pred_region
      _
    $region29: #{tpu_custom_call.1} parent=1 // pred_fallthru
      _
    %v28 = vld [vmem:[%s0] sm:$0xff]
    %v29 = vld [vmem:[%s0 + $0x8] sm:$0xff]
    %v30 = vpack.c.bf16 %v29, %v28
    %v31 = vld [vmem:[%s1] sm:$0xf]
    %v32 = vld [vmem:[%s2] sm:$0x1]
    %v34 = vlaneseq
    %v35 = vshrl.u32 %v34, 7
    %v36 = vsub.s32 0, %v35
    %v37 = vrot.slane %v32, %v36
    %vm39 = vcmask 64512
    %v41 = vsel %vm39, %v30, 0
    %vm43 = vcmask 1043456
    %v45 = vsel %vm43, %v31, 0
    %47 = vmatprep.subr.bf16.mxu0 0
    %48 = vmatpush1.bf16.msra.mxu0 %v45
    %49 = vmatprep.subr.bf16.mxu0 0
    %50 = vmatpush1.bf16.msra.mxu0 0
    %51 = vmatprep.subr.bf16.mxu0 0
    %52 = vmatpush1.bf16.msra.mxu0 0
    %53 = vmatprep.subr.bf16.mxu0 0
    %54 = vmatpush1.bf16.msra.mxu0 0
    %55 = vmatprep.subr.bf16.mxu0 0
    %56 = vmatpush1.bf16.msra.mxu0 0
    %57 = vmatprep.subr.bf16.mxu0 0
    %58 = vmatpush1.bf16.msra.mxu0 0
    %59 = vmatprep.subr.bf16.mxu0 0
    %60 = vmatpush1.bf16.msra.mxu0 0
    %61 = vmatprep.subr.bf16.mxu0 0
    %62 = vmatpush1.bf16.msra.mxu0 0
    %63 = vmatprep.subr.bf16.mxu0 0
    %64 = vmatpush1.bf16.msra.mxu0 0
    %65 = vmatprep.subr.bf16.mxu0 0
    %66 = vmatpush1.bf16.msra.mxu0 0
    %67 = vmatprep.subr.bf16.mxu0 0
    %68 = vmatpush1.bf16.msra.mxu0 0
    %69 = vmatprep.subr.bf16.mxu0 0
    %70 = vmatpush1.bf16.msra.mxu0 0
    %71 = vmatprep.subr.bf16.mxu0 0
    %72 = vmatpush1.bf16.msra.mxu0 0
    %73 = vmatprep.subr.bf16.mxu0 0
    %74 = vmatpush1.bf16.msra.mxu0 0
    %75 = vmatprep.subr.bf16.mxu0 0
    %76 = vmatpush1.bf16.msra.mxu0 0
    %77 = vmatprep.subr.bf16.mxu0 0
    %78 = vmatpush1.bf16.msra.mxu0 0
    %79 = vmatprep.mubr.bf16.mxu0 0
    %80 = vmatmul.mubr.bf16.gmra.mrb[0].mxu0 %v41
    %v81 = vpop.f32.mrb[0].mxu0
    %v82 = vadd.f32 %v37, %v81
    %v83 = vpop.f32.mrb[0].mxu0
    %v84 = vpop.f32.mrb[0].mxu0
    %v85 = vadd.f32 %v37, %v84
    %v86 = vpop.f32.mrb[0].mxu0
    %87 = vdwg.mxu0
    %v88 = vmax.f32 %v82, 0.0
    %v89 = vmax.f32 %v85, 0.0
    %v90 = vpack.c.bf16 %v89, %v88
    %v91 = vld [vmem:[%s3] sm:$0xf]
    %v92 = vld [vmem:[%s3 + $0x4] sm:$0xf]
    %v93 = vld [vmem:[%s3 + $0x8] sm:$0xf]
    %v94 = vld [vmem:[%s3 + $0xc] sm:$0xf]
    %v95 = vld [vmem:[%s3 + $0x10] sm:$0xf]
    %v96 = vld [vmem:[%s3 + $0x14] sm:$0xf]
    %v97 = vld [vmem:[%s3 + $0x18] sm:$0xf]
    %v98 = vld [vmem:[%s3 + $0x1c] sm:$0xf]
    %v99 = vld [vmem:[%s3 + $0x20] sm:$0xf]
    %v100 = vld [vmem:[%s3 + $0x24] sm:$0xf]
    %v101 = vld [vmem:[%s3 + $0x28] sm:$0xf]
    %v102 = vld [vmem:[%s3 + $0x2c] sm:$0xf]
    %v103 = vld [vmem:[%s3 + $0x30] sm:$0xf]
    %v104 = vld [vmem:[%s3 + $0x34] sm:$0xf]
    %v105 = vld [vmem:[%s3 + $0x38] sm:$0xf]
    %v106 = vld [vmem:[%s3 + $0x3c] sm:$0xf]
    %v107 = vld [vmem:[%s4] sm:$0x1]
    %v109 = vlaneseq
    %v110 = vshrl.u32 %v109, 7
    %v111 = vsub.s32 0, %v110
    %v112 = vrot.slane %v107, %v111
    %v130 = vunpack.c.l.b16 %v91
    %v131 = vunpack.c.l.b16 %v92
    %v132 = vunpack.c.l.b16 %v93
    %v133 = vunpack.c.l.b16 %v94
    %v134 = vunpack.c.l.b16 %v95
    %v135 = vunpack.c.l.b16 %v96
    %v136 = vunpack.c.l.b16 %v97
    %v137 = vunpack.c.l.b16 %v98
    %v138 = vunpack.c.l.b16 %v99
    %v139 = vunpack.c.l.b16 %v100
    %v140 = vunpack.c.l.b16 %v101
    %v141 = vunpack.c.l.b16 %v102
    %v142 = vunpack.c.l.b16 %v103
    %v143 = vunpack.c.l.b16 %v104
    %v144 = vunpack.c.l.b16 %v105
    %v145 = vunpack.c.l.b16 %v106
    %v146 = vpack.c.b16 %v131, %v130
    %v147 = vpack.c.b16 %v133, %v132
    %v148 = vpack.c.b16 %v135, %v134
    %v149 = vpack.c.b16 %v137, %v136
    %v150 = vpack.c.b16 %v139, %v138
    %v151 = vpack.c.b16 %v141, %v140
    %v152 = vpack.c.b16 %v143, %v142
    %v153 = vpack.c.b16 %v145, %v144
    %162 = vmatprep.subr.bf16.mxu0 0
    %163 = vmatpush1.bf16.msra.mxu0 %v146
    %164 = vmatprep.subr.bf16.mxu0 0
    %165 = vmatpush1.bf16.msra.mxu0 %v147
    %166 = vmatprep.subr.bf16.mxu0 0
    %167 = vmatpush1.bf16.msra.mxu0 %v148
    %168 = vmatprep.subr.bf16.mxu0 0
    %169 = vmatpush1.bf16.msra.mxu0 %v149
    %170 = vmatprep.subr.bf16.mxu0 0
    %171 = vmatpush1.bf16.msra.mxu0 %v150
    %172 = vmatprep.subr.bf16.mxu0 0
    %173 = vmatpush1.bf16.msra.mxu0 %v151
    %174 = vmatprep.subr.bf16.mxu0 0
    %175 = vmatpush1.bf16.msra.mxu0 %v152
    %176 = vmatprep.subr.bf16.mxu0 0
    %177 = vmatpush1.bf16.msra.mxu0 %v153
    %178 = vmatprep.subr.bf16.mxu0 0
    %179 = vmatpush1.bf16.msra.mxu0 0
    %180 = vmatprep.subr.bf16.mxu0 0
    %181 = vmatpush1.bf16.msra.mxu0 0
    %182 = vmatprep.subr.bf16.mxu0 0
    %183 = vmatpush1.bf16.msra.mxu0 0
    %184 = vmatprep.subr.bf16.mxu0 0
    %185 = vmatpush1.bf16.msra.mxu0 0
    %186 = vmatprep.subr.bf16.mxu0 0
    %187 = vmatpush1.bf16.msra.mxu0 0
    %188 = vmatprep.subr.bf16.mxu0 0
    %189 = vmatpush1.bf16.msra.mxu0 0
    %190 = vmatprep.subr.bf16.mxu0 0
    %191 = vmatpush1.bf16.msra.mxu0 0
    %192 = vmatprep.subr.bf16.mxu0 0
    %193 = vmatpush1.bf16.msra.mxu0 0
    %194 = vmatprep.mubr.bf16.mxu0 0
    %195 = vmatmul.mubr.bf16.gmra.mrb[0].mxu0 %v90
    %v196 = vpop.f32.mrb[0].mxu0
    %v197 = vadd.f32 %v112, %v196
    %v198 = vpop.f32.mrb[0].mxu0
    %v199 = vpop.f32.mrb[0].mxu0
    %v200 = vadd.f32 %v112, %v199
    %v201 = vpop.f32.mrb[0].mxu0
    %202 = vdwg.mxu0
    %v203 = vmax.f32 %v197, 0.0
    %v204 = vmax.f32 %v200, 0.0
    %v205 = vpack.c.bf16 %v204, %v203
    %v206 = vld [vmem:[%s5] sm:$0xf]
    %v207 = vld [vmem:[%s5 + $0x4] sm:$0xf]
    %v208 = vld [vmem:[%s5 + $0x8] sm:$0xf]
    %v209 = vld [vmem:[%s5 + $0xc] sm:$0xf]
    %v210 = vld [vmem:[%s5 + $0x10] sm:$0xf]
    %v211 = vld [vmem:[%s5 + $0x14] sm:$0xf]
    %v212 = vld [vmem:[%s5 + $0x18] sm:$0xf]
    %v213 = vld [vmem:[%s5 + $0x1c] sm:$0xf]
    %v214 = vld [vmem:[%s5 + $0x20] sm:$0xf]
    %v215 = vld [vmem:[%s5 + $0x24] sm:$0xf]
    %v216 = vld [vmem:[%s5 + $0x28] sm:$0xf]
    %v217 = vld [vmem:[%s5 + $0x2c] sm:$0xf]
    %v218 = vld [vmem:[%s5 + $0x30] sm:$0xf]
    %v219 = vld [vmem:[%s5 + $0x34] sm:$0xf]
    %v220 = vld [vmem:[%s5 + $0x38] sm:$0xf]
    %v221 = vld [vmem:[%s5 + $0x3c] sm:$0xf]
    %v222 = vld [vmem:[%s6] sm:$0x1]
    %v224 = vlaneseq
    %v225 = vshrl.u32 %v224, 7
    %v226 = vsub.s32 0, %v225
    %v227 = vrot.slane %v222, %v226
    %v245 = vunpack.c.l.b16 %v206
    %v246 = vunpack.c.l.b16 %v207
    %v247 = vunpack.c.l.b16 %v208
    %v248 = vunpack.c.l.b16 %v209
    %v249 = vunpack.c.l.b16 %v210
    %v250 = vunpack.c.l.b16 %v211
    %v251 = vunpack.c.l.b16 %v212
    %v252 = vunpack.c.l.b16 %v213
    %v253 = vunpack.c.l.b16 %v214
    %v254 = vunpack.c.l.b16 %v215
    %v255 = vunpack.c.l.b16 %v216
    %v256 = vunpack.c.l.b16 %v217
    %v257 = vunpack.c.l.b16 %v218
    %v258 = vunpack.c.l.b16 %v219
    %v259 = vunpack.c.l.b16 %v220
    %v260 = vunpack.c.l.b16 %v221
    %v261 = vpack.c.b16 %v246, %v245
    %v262 = vpack.c.b16 %v248, %v247
    %v263 = vpack.c.b16 %v250, %v249
    %v264 = vpack.c.b16 %v252, %v251
    %v265 = vpack.c.b16 %v254, %v253
    %v266 = vpack.c.b16 %v256, %v255
    %v267 = vpack.c.b16 %v258, %v257
    %v268 = vpack.c.b16 %v260, %v259
    %277 = vmatprep.subr.bf16.mxu0 0
    %278 = vmatpush1.bf16.msra.mxu0 %v261
    %279 = vmatprep.subr.bf16.mxu0 0
    %280 = vmatpush1.bf16.msra.mxu0 %v262
    %281 = vmatprep.subr.bf16.mxu0 0
    %282 = vmatpush1.bf16.msra.mxu0 %v263
    %283 = vmatprep.subr.bf16.mxu0 0
    %284 = vmatpush1.bf16.msra.mxu0 %v264
    %285 = vmatprep.subr.bf16.mxu0 0
    %286 = vmatpush1.bf16.msra.mxu0 %v265
    %287 = vmatprep.subr.bf16.mxu0 0
    %288 = vmatpush1.bf16.msra.mxu0 %v266
    %289 = vmatprep.subr.bf16.mxu0 0
    %290 = vmatpush1.bf16.msra.mxu0 %v267
    %291 = vmatprep.subr.bf16.mxu0 0
    %292 = vmatpush1.bf16.msra.mxu0 %v268
    %293 = vmatprep.subr.bf16.mxu0 0
    %294 = vmatpush1.bf16.msra.mxu0 0
    %295 = vmatprep.subr.bf16.mxu0 0
    %296 = vmatpush1.bf16.msra.mxu0 0
    %297 = vmatprep.subr.bf16.mxu0 0
    %298 = vmatpush1.bf16.msra.mxu0 0
    %299 = vmatprep.subr.bf16.mxu0 0
    %300 = vmatpush1.bf16.msra.mxu0 0
    %301 = vmatprep.subr.bf16.mxu0 0
    %302 = vmatpush1.bf16.msra.mxu0 0
    %303 = vmatprep.subr.bf16.mxu0 0
    %304 = vmatpush1.bf16.msra.mxu0 0
    %305 = vmatprep.subr.bf16.mxu0 0
    %306 = vmatpush1.bf16.msra.mxu0 0
    %307 = vmatprep.subr.bf16.mxu0 0
    %308 = vmatpush1.bf16.msra.mxu0 0
    %309 = vmatprep.mubr.bf16.mxu0 0
    %310 = vmatmul.mubr.bf16.gmra.mrb[0].mxu0 %v205
    %v311 = vpop.f32.mrb[0].mxu0
    %v312 = vadd.f32 %v227, %v311
    %v313 = vpop.f32.mrb[0].mxu0
    %v314 = vpop.f32.mrb[0].mxu0
    %v315 = vadd.f32 %v227, %v314
    %v316 = vpop.f32.mrb[0].mxu0
    %317 = vdwg.mxu0
    %v318 = vtanh.pop %v312
    %v319 = vtanh.pop %v315
    %v320 = vmul.f32 %v318, 2.0
    %v321 = vmul.f32 %v319, 2.0
    %vm322 = vcmask 31744
    %323 = vst.msk [vmem:[#allocation2] sm:$0xff] %vm322, %v320
    %324 = vst.msk [vmem:[#allocation2 + $0x8] sm:$0xff] %vm322, %v321
    // Predicated region
    $region30: #{tpu_custom_call.1} parent=1 // pred_check
      _
    $region31: #{tpu_custom_call.1} parent=1 // pred_check_branch
      %326 = sbr.rel (0) target = $region33
    $region32: #{tpu_custom_call.1} parent=1 // pred_region
      %s328 = ssub.s32 256, 32
      %329 = vsyncadd [#allocation3], %s328
      %s330 = sshll.u32 [#allocation2], 4
      %s331 = int_to_ptr.vmem [resolvable:$true] %s330
      %336 = dma.vmem_to_hbm [thread:$0]  %s331, 32, %s7, [#allocation3], 32, 32, 2
    $region33: #{tpu_custom_call.1} parent=1 // pred_fallthru
      _
    // Predicated region
    $region34: #{tpu_custom_call.1} parent=1 // pred_check
      _
    $region35: #{tpu_custom_call.1} parent=1 // pred_check_branch
      %338 = sbr.rel (0) target = $region37
    $region36: #{tpu_custom_call.1} parent=1 // pred_region
      %339 = dma.done [#allocation3], 256
    $region37: #{tpu_custom_call.1} parent=1 // pred_fallthru
      _
    %340 = vsyncpa [#allocation3], 1

</llo_original>
